<compile_context>
chip_gen: v6e
topology: v6e:2x2x1
jax: 0.10.0
libtpu: 0.0.40
codegen_flags: <defaults>
</compile_context>

<pallas_src>
import functools

import numpy as np
import jax
import jax.numpy as jnp
from jax import lax
from jax.experimental import pallas as pl
from jax.experimental.pallas import tpu as pltpu


VMEM_LIMIT_BYTES = 64 * 1024 * 1024   # <= physical VMEM on v5e/v6e/v7x, > default scoped limits


# ------------------- pass 1: tiled GroupNorm sum / sum-of-squares -----------------
def gn_sums_kernel(x_ref, sum_ref, sq_ref):
    """Accumulate per-channel sum and sum(x^2) over L tiles (reduction grid axis)."""
    li = pl.program_id(1)
    x = x_ref[0].astype(jnp.float32)                      # (C, tl)
    s = jnp.sum(x, axis=1, keepdims=True)                 # (C, 1)
    s2 = jnp.sum(x * x, axis=1, keepdims=True)            # (C, 1)

    @pl.when(li == 0)
    def _init():
        sum_ref[0] = s
        sq_ref[0] = s2

    @pl.when(li != 0)
    def _accum():
        sum_ref[0] = sum_ref[0] + s
        sq_ref[0] = sq_ref[0] + s2


# ------------------- pass 2: fused QKV projection (GN affine in-kernel) -----------
def qkv_proj_kernel(scale_ref, shift_ref, x_ref, wqkv_ref, bqkv_ref,
                    q_ref, k_ref, v_ref, *, C):
    """h = x*scale + shift (GroupNorm folded); qkv = Wqkv^T @ h + b, written as bf16."""
    scale = scale_ref[0]                                  # (C, 1) f32
    shift = shift_ref[0]
    h = (x_ref[0].astype(jnp.float32) * scale + shift).astype(jnp.bfloat16)   # (C, tl)
    # Native (M,K)x(K,N): Wqkv^T is (3C, C), contract its dim 1 with h dim 0.
    qkv = lax.dot_general(wqkv_ref[...], h, (((1,), (0,)), ((), ())),
                          preferred_element_type=jnp.float32) + bqkv_ref[...]  # (3C, tl)
    q_ref[0] = qkv[:C, :].astype(jnp.bfloat16)
    k_ref[0] = qkv[C:2 * C, :].astype(jnp.bfloat16)
    v_ref[0] = qkv[2 * C:, :].astype(jnp.bfloat16)


# ------------------- pass 3: flash-style channel attention ------------------------
def attn_kernel(x_ref, q_ref, kt_ref, v_ref, w3_ref, b3_ref,
                out_ref, m_scr, l_scr, acc_scr, *, skip_rescale):
    ki = pl.program_id(2)
    nk = pl.num_programs(2)

    @pl.when(ki == 0)
    def _init():
        m_scr[...] = jnp.full(m_scr.shape, -jnp.inf, jnp.float32)
        l_scr[...] = jnp.zeros(l_scr.shape, jnp.float32)
        acc_scr[...] = jnp.zeros(acc_scr.shape, jnp.float32)

    q = q_ref[0]                                          # (C, tq) bf16 (precomputed)
    kt = kt_ref[0]                                        # (tk, C) bf16 (pre-transposed)
    v = v_ref[0]                                          # (C, tk) bf16

    # Logits, native contraction: s[i, l] = sum_c kt[i, c] * q[c, l].
    s = lax.dot_general(kt, q, (((1,), (0,)), ((), ())),
                        preferred_element_type=jnp.float32)          # (tk, tq)

    # Online softmax over the key (sublane) axis; stats are (1, tq) rows so they
    # broadcast over the (C, tq) accumulator with no transposes.
    m_prev = m_scr[...]
    m_new = jnp.maximum(m_prev, jnp.max(s, axis=0, keepdims=True))   # (1, tq)
    alpha = jnp.exp(m_prev - m_new)
    # NOTE: on v6e/v7x `jnp.exp((s - m_new).astype(bf16))` would halve EUP/cast
    # work; kept f32 here so the same kernel stays optimal-ish on v5e too.
    p = jnp.exp(s - m_new)                                           # (tk, tq)
    l_scr[...] = alpha * l_scr[...] + jnp.sum(p, axis=0, keepdims=True)
    # acc[c, l] += sum_i v[c, i] * p[i, l]  (native contraction)
    acc_scr[...] = alpha * acc_scr[...] + lax.dot_general(
        v, p.astype(jnp.bfloat16), (((1,), (0,)), ((), ())),
        preferred_element_type=jnp.float32)
    m_scr[...] = m_new

    @pl.when(ki == nk - 1)
    def _finalize():
        inv_l = pl.reciprocal(l_scr[...], approx=True)    # (1, tq), EUP
        ha = (acc_scr[...] * inv_l).astype(jnp.bfloat16)  # (C, tq)
        ho = lax.dot_general(w3_ref[...], ha, (((1,), (0,)), ((), ())),
                             preferred_element_type=jnp.float32) + b3_ref[...]
        out = x_ref[0].astype(jnp.float32) + ho
        if skip_rescale:
            out = out * jnp.float32(1.0 / np.sqrt(2.0))
        out_ref[0] = out.astype(out_ref.dtype)


def _choose_tile(L, target):
    """Largest multiple of 128 dividing L that is <= target, else L itself."""
    if L <= target:
        return L
    t = (target // 128) * 128
    while t >= 128:
        if L % t == 0:
            return t
        t -= 128
    # TODO(synk): for L with no 128-multiple divisor, pad L to a multiple of 128
    # and mask padded keys in the softmax instead of falling back to one full-L
    # tile (VMEM footgun for very large, oddly-sized L).
    return L


def attn_blockpp(x, params, *, num_groups, skip_rescale=False, eps=1e-6,
                 q_tile=512, kv_tile=512):
    """Pallas forward for AttnBlockpp. x: (B, C, L)."""
    B, C, L = x.shape
    gamma, beta, W0, b0, W1, b1, W2, b2, W3, b3 = params
    f32 = jnp.float32
    col = lambda v: v.reshape(-1, 1).astype(f32)

    # ---- host-side parameter prep (cheap, done once) -----------------------
    qs = float(C) ** -0.5                                   # fold 1/sqrt(C) into Q proj
    # Pre-transposed weights so every in-kernel matmul is native (M,K)x(K,N).
    Wqkv_T = jnp.concatenate([W0.T.astype(f32) * qs, W1.T.astype(f32), W2.T.astype(f32)],
                             axis=0).astype(jnp.bfloat16)   # (3C, C)
    bqkv = jnp.concatenate([col(b0) * qs, col(b1), col(b2)], axis=0)   # (3C, 1)
    W3_T = W3.T.astype(jnp.bfloat16)                        # (C, C)
    b3c = col(b3)
    gamma_c, beta_c = col(gamma), col(beta)

    # ---- pass 1: tiled per-channel sums ------------------------------------
    tl = _choose_tile(L, max(q_tile, kv_tile))
    nl = L // tl
    sums, sqs = pl.pallas_call(
        gn_sums_kernel,
        out_shape=(jax.ShapeDtypeStruct((B, C, 1), f32),
                   jax.ShapeDtypeStruct((B, C, 1), f32)),
        grid=(B, nl),
        in_specs=[pl.BlockSpec((1, C, tl), lambda b, l: (b, 0, l))],
        out_specs=(pl.BlockSpec((1, C, 1), lambda b, l: (b, 0, 0)),
                   pl.BlockSpec((1, C, 1), lambda b, l: (b, 0, 0))),
        compiler_params=pltpu.CompilerParams(
            dimension_semantics=("parallel", "arbitrary"),
            vmem_limit_bytes=VMEM_LIMIT_BYTES),
    )(x)

    # Group fold + rsqrt + gamma/beta on the tiny (B, C) sums in plain JAX.
    gs = C // num_groups
    n = float(gs * L)
    sum_g = sums.reshape(B, num_groups, gs).sum(axis=2)               # (B, G)
    sq_g = sqs.reshape(B, num_groups, gs).sum(axis=2)
    mean_g = sum_g / n
    var_g = jnp.maximum(sq_g / n - mean_g * mean_g, 0.0)
    rstd_g = lax.rsqrt(var_g + eps)
    mean_c = jnp.repeat(mean_g, gs, axis=1).reshape(B, C, 1)
    rstd_c = jnp.repeat(rstd_g, gs, axis=1).reshape(B, C, 1)
    scale = gamma_c.reshape(1, C, 1) * rstd_c                          # (B, C, 1)
    shift = beta_c.reshape(1, C, 1) - mean_c * scale                   # (B, C, 1)

    # ---- pass 2: fused QKV projection, written once as bf16 ----------------
    q_cl, k_cl, v_cl = pl.pallas_call(
        functools.partial(qkv_proj_kernel, C=C),
        out_shape=(jax.ShapeDtypeStruct((B, C, L), jnp.bfloat16),
                   jax.ShapeDtypeStruct((B, C, L), jnp.bfloat16),
                   jax.ShapeDtypeStruct((B, C, L), jnp.bfloat16)),
        grid=(B, nl),
        in_specs=[
            pl.BlockSpec((1, C, 1), lambda b, l: (b, 0, 0)),    # scale
            pl.BlockSpec((1, C, 1), lambda b, l: (b, 0, 0)),    # shift
            pl.BlockSpec((1, C, tl), lambda b, l: (b, 0, l)),   # x tile
            pl.BlockSpec((3 * C, C), lambda b, l: (0, 0)),      # Wqkv^T (bf16)
            pl.BlockSpec((3 * C, 1), lambda b, l: (0, 0)),      # bqkv
        ],
        out_specs=(pl.BlockSpec((1, C, tl), lambda b, l: (b, 0, l)),
                   pl.BlockSpec((1, C, tl), lambda b, l: (b, 0, l)),
                   pl.BlockSpec((1, C, tl), lambda b, l: (b, 0, l))),
        compiler_params=pltpu.CompilerParams(
            dimension_semantics=("parallel", "parallel"),
            vmem_limit_bytes=VMEM_LIMIT_BYTES),
    )(scale, shift, x, Wqkv_T, bqkv)

    # One cheap XLA transpose of K so the hot-loop logits matmul is native
    # (tk, C) x (C, tq) with no in-loop XLU transposes.
    k_t = jnp.swapaxes(k_cl, 1, 2)                                     # (B, L, C) bf16

    # ---- pass 3: flash-style attention over (B, q-blocks, kv-blocks) -------
    tq_target = q_tile
    if B == 1:
        # Keep >= 2 query blocks so both v7x TensorCores get work.
        tq_target = min(tq_target, max(128, L // 2))
    tq = _choose_tile(L, tq_target)
    tk = _choose_tile(L, kv_tile)
    nq, nk = L // tq, L // tk

    kernel = functools.partial(attn_kernel, skip_rescale=skip_rescale)
    # TODO(synk): at production C (>=512) single-buffer the grid-invariant
    # W3/b3 inputs (pipeline_mode=pl.Buffered(1)) to reclaim ~C^2 bytes of VMEM.
    return pl.pallas_call(
        kernel,
        out_shape=jax.ShapeDtypeStruct((B, C, L), x.dtype),
        grid=(B, nq, nk),
        in_specs=[
            pl.BlockSpec((1, C, tq), lambda b, qi, ki: (b, 0, qi)),    # x (residual tile)
            pl.BlockSpec((1, C, tq), lambda b, qi, ki: (b, 0, qi)),    # Q (bf16)
            pl.BlockSpec((1, tk, C), lambda b, qi, ki: (b, ki, 0)),    # K^T (bf16)
            pl.BlockSpec((1, C, tk), lambda b, qi, ki: (b, 0, ki)),    # V (bf16)
            pl.BlockSpec((C, C), lambda b, qi, ki: (0, 0)),            # W3^T (bf16)
            pl.BlockSpec((C, 1), lambda b, qi, ki: (0, 0)),            # b3
        ],
        out_specs=pl.BlockSpec((1, C, tq), lambda b, qi, ki: (b, 0, qi)),
        scratch_shapes=[
            pltpu.VMEM((1, tq), f32),     # running max
            pltpu.VMEM((1, tq), f32),     # running denom
            pltpu.VMEM((C, tq), f32),     # output accumulator
        ],
        compiler_params=pltpu.CompilerParams(
            dimension_semantics=("parallel", "parallel", "arbitrary"),
            vmem_limit_bytes=VMEM_LIMIT_BYTES),
    )(x, q_cl, k_t, v_cl, W3_T, b3c)


# ---------------------------- pure-JAX reference ----------------------------
def ref_forward(x, params, *, num_groups, skip_rescale=False, eps=1e-6):
    B, C, L = x.shape
    gamma, beta, W0, b0, W1, b1, W2, b2, W3, b3 = params
    xg = x.reshape(B, num_groups, C // num_groups, L)
    mu = xg.mean(axis=(2, 3), keepdims=True)
    var = ((xg - mu) ** 2).mean(axis=(2, 3), keepdims=True)
    h = ((xg - mu) / jnp.sqrt(var + eps)).reshape(B, C, L)
    h = h * gamma.reshape(1, C, 1) + beta.reshape(1, C, 1)

    def nin(t, W, b):
        return jnp.einsum('bcl,co->bol', t, W) + b.reshape(1, C, 1)

    q, k, v = nin(h, W0, b0), nin(h, W1, b1), nin(h, W2, b2)
    w = jnp.einsum('bcl,bci->bli', q, k) * (float(C) ** -0.5)
    w = jax.nn.softmax(w, axis=-1)
    h = jnp.einsum('bli,bci->bcl', w, v)
    h = nin(h, W3, b3)
    out = x + h
    if skip_rescale:
        out = out / np.sqrt(2.0)
    return out


def make_params(key, C, init_scale=0.0):
    """Deterministic synthetic parameters matching AttnBlockpp.__init__ shapes."""
    ks = jax.random.split(key, 8)
    scale_main = 0.1                      # NIN default init_scale
    scale_last = max(init_scale, 1e-10)   # score_sde replaces 0.0 with 1e-10
    gamma = jnp.ones((C,), jnp.float32)   # GroupNorm affine defaults
    beta = jnp.zeros((C,), jnp.float32)
    W0 = jax.random.normal(ks[0], (C, C), jnp.float32) * scale_main
    W1 = jax.random.normal(ks[1], (C, C), jnp.float32) * scale_main
    W2 = jax.random.normal(ks[2], (C, C), jnp.float32) * scale_main
    W3 = jax.random.normal(ks[3], (C, C), jnp.float32) * scale_last
    b0 = jnp.zeros((C,), jnp.float32)
    b1 = jnp.zeros((C,), jnp.float32)
    b2 = jnp.zeros((C,), jnp.float32)
    b3 = jnp.zeros((C,), jnp.float32)
    return (gamma, beta, W0, b0, W1, b1, W2, b2, W3, b3)


if __name__ == "__main__":
    key = jax.random.PRNGKey(0)
    kx, kx2, kp1, kp2 = jax.random.split(key, 4)

    # bf16 MXU operands with f32 accumulation -> compare at bf16-level tolerance.
    RTOL, ATOL = 1e-2, 1e-2

    B, C, L = 2, 8, 16
    num_groups = min(C // 4, 32)          # matches nn.GroupNorm(min(C//4, 32), C)
    x = jax.random.normal(kx, (B, C, L), jnp.float32)

    # Case 1: module defaults (init_scale=0.0, skip_rescale=False), single tile.
    params0 = make_params(kp1, C, init_scale=0.0)
    out0 = attn_blockpp(x, params0, num_groups=num_groups, skip_rescale=False)
    jax.block_until_ready(out0)
    ref0 = ref_forward(x, params0, num_groups=num_groups, skip_rescale=False)
    np.testing.assert_allclose(np.asarray(out0), np.asarray(ref0), rtol=RTOL, atol=ATOL)

    # Case 2: nonzero output projection + skip_rescale, single tile.
    params1 = make_params(kp2, C, init_scale=0.1)
    out1 = attn_blockpp(x, params1, num_groups=num_groups, skip_rescale=True)
    jax.block_until_ready(out1)
    ref1 = ref_forward(x, params1, num_groups=num_groups, skip_rescale=True)
    np.testing.assert_allclose(np.asarray(out1), np.asarray(ref1), rtol=RTOL, atol=ATOL)

    # Case 3: longer sequence with explicit 128-wide tiles to exercise the
    # multi-block online-softmax (flash) path and the tiled GN reduction:
    # grid = (B, 2, 2) for attention, (B, 2) for the stats / projection passes.
    L2 = 256
    x2 = jax.random.normal(kx2, (B, C, L2), jnp.float32)
    out2 = attn_blockpp(x2, params1, num_groups=num_groups, skip_rescale=True,
                        q_tile=128, kv_tile=128)
    jax.block_until_ready(out2)
    ref2 = ref_forward(x2, params1, num_groups=num_groups, skip_rescale=True)
    np.testing.assert_allclose(np.asarray(out2), np.asarray(ref2), rtol=RTOL, atol=ATOL)

    print("KERNEL_OK")
</pallas_src>

<mosaic_0001>
module attributes {stable_mosaic.version = 11 : i64} {
  func.func @gn_sums_kernel(%arg0: i32, %arg1: i32, %arg2: memref<1x8x16xf32, #tpu.memory_space<vmem>>, %arg3: memref<1x8x1xf32, #tpu.memory_space<vmem>>, %arg4: memref<1x8x1xf32, #tpu.memory_space<vmem>>) attributes {dimension_semantics = [#tpu.dimension_semantics<parallel>, #tpu.dimension_semantics<arbitrary>], iteration_bounds = array<i64: 2, 1>, scalar_prefetch = 0 : i64, scratch_operands = 0 : i64, tpu.core_type = #tpu.core_type<tc>, window_params = [{transform_indices = @transform_0, window_bounds = array<i64: 1, 8, 16>}, {transform_indices = @transform_1, window_bounds = array<i64: 1, 8, 1>}, {transform_indices = @transform_2, window_bounds = array<i64: 1, 8, 1>}]} {
    %c0 = arith.constant 0 : index
    %c0_0 = arith.constant 0 : index
    %c0_1 = arith.constant 0 : index
    %0 = vector.load %arg2[%c0, %c0_0, %c0_1] : memref<1x8x16xf32, #tpu.memory_space<vmem>>, vector<1x8x16xf32>
    %1 = vector.shape_cast %0 : vector<1x8x16xf32> to vector<8x16xf32>
    %cst = arith.constant dense<0.000000e+00> : vector<8xf32>
    %2 = vector.multi_reduction <add>, %1, %cst [1] : vector<8x16xf32> to vector<8xf32>
    %3 = vector.shape_cast %2 : vector<8xf32> to vector<8x1xf32>
    %4 = arith.mulf %1, %1 : vector<8x16xf32>
    %cst_2 = arith.constant dense<0.000000e+00> : vector<8xf32>
    %5 = vector.multi_reduction <add>, %4, %cst_2 [1] : vector<8x16xf32> to vector<8xf32>
    %6 = vector.shape_cast %5 : vector<8xf32> to vector<8x1xf32>
    %c0_i32 = arith.constant 0 : i32
    %7 = arith.cmpi eq, %arg1, %c0_i32 : i32
    %8 = arith.extui %7 : i1 to i32
    %c0_i32_3 = arith.constant 0 : i32
    %9 = arith.cmpi ne, %8, %c0_i32_3 : i32
    scf.if %9 {
      %c0_6 = arith.constant 0 : index
      %c0_7 = arith.constant 0 : index
      %c0_8 = arith.constant 0 : index
      %13 = vector.load %arg3[%c0_6, %c0_7, %c0_8] : memref<1x8x1xf32, #tpu.memory_space<vmem>>, vector<1x8x1xf32>
      %14 = vector.shape_cast %13 : vector<1x8x1xf32> to vector<8x1xf32>
      %15 = vector.shape_cast %3 : vector<8x1xf32> to vector<1x8x1xf32>
      tpu.vector_store %arg3[%c0_6, %c0_7, %c0_8], %15 {strides = array<i32>} : memref<1x8x1xf32, #tpu.memory_space<vmem>>, vector<1x8x1xf32>,
      %c0_9 = arith.constant 0 : index
      %c0_10 = arith.constant 0 : index
      %c0_11 = arith.constant 0 : index
      %16 = vector.load %arg4[%c0_9, %c0_10, %c0_11] : memref<1x8x1xf32, #tpu.memory_space<vmem>>, vector<1x8x1xf32>
      %17 = vector.shape_cast %16 : vector<1x8x1xf32> to vector<8x1xf32>
      %18 = vector.shape_cast %6 : vector<8x1xf32> to vector<1x8x1xf32>
      tpu.vector_store %arg4[%c0_9, %c0_10, %c0_11], %18 {strides = array<i32>} : memref<1x8x1xf32, #tpu.memory_space<vmem>>, vector<1x8x1xf32>,
    } else {
    }
    %c0_i32_4 = arith.constant 0 : i32
    %10 = arith.cmpi ne, %arg1, %c0_i32_4 : i32
    %11 = arith.extui %10 : i1 to i32
    %c0_i32_5 = arith.constant 0 : i32
    %12 = arith.cmpi ne, %11, %c0_i32_5 : i32
    scf.if %12 {
      %c0_6 = arith.constant 0 : index
      %c0_7 = arith.constant 0 : index
      %c0_8 = arith.constant 0 : index
      %13 = vector.load %arg3[%c0_6, %c0_7, %c0_8] : memref<1x8x1xf32, #tpu.memory_space<vmem>>, vector<1x8x1xf32>
      %14 = vector.shape_cast %13 : vector<1x8x1xf32> to vector<8x1xf32>
      %15 = arith.addf %14, %3 : vector<8x1xf32>
      %c0_9 = arith.constant 0 : index
      %c0_10 = arith.constant 0 : index
      %c0_11 = arith.constant 0 : index
      %16 = vector.load %arg3[%c0_9, %c0_10, %c0_11] : memref<1x8x1xf32, #tpu.memory_space<vmem>>, vector<1x8x1xf32>
      %17 = vector.shape_cast %16 : vector<1x8x1xf32> to vector<8x1xf32>
      %18 = vector.shape_cast %15 : vector<8x1xf32> to vector<1x8x1xf32>
      tpu.vector_store %arg3[%c0_9, %c0_10, %c0_11], %18 {strides = array<i32>} : memref<1x8x1xf32, #tpu.memory_space<vmem>>, vector<1x8x1xf32>,
      %c0_12 = arith.constant 0 : index
      %c0_13 = arith.constant 0 : index
      %c0_14 = arith.constant 0 : index
      %19 = vector.load %arg4[%c0_12, %c0_13, %c0_14] : memref<1x8x1xf32, #tpu.memory_space<vmem>>, vector<1x8x1xf32>
      %20 = vector.shape_cast %19 : vector<1x8x1xf32> to vector<8x1xf32>
      %21 = arith.addf %20, %6 : vector<8x1xf32>
      %c0_15 = arith.constant 0 : index
      %c0_16 = arith.constant 0 : index
      %c0_17 = arith.constant 0 : index
      %22 = vector.load %arg4[%c0_15, %c0_16, %c0_17] : memref<1x8x1xf32, #tpu.memory_space<vmem>>, vector<1x8x1xf32>
      %23 = vector.shape_cast %22 : vector<1x8x1xf32> to vector<8x1xf32>
      %24 = vector.shape_cast %21 : vector<8x1xf32> to vector<1x8x1xf32>
      tpu.vector_store %arg4[%c0_15, %c0_16, %c0_17], %24 {strides = array<i32>} : memref<1x8x1xf32, #tpu.memory_space<vmem>>, vector<1x8x1xf32>,
    } else {
    }
    return
  }
  func.func @transform_0(%arg0: i32, %arg1: i32) -> (i32, i32, i32) {
    %c0_i32 = arith.constant 0 : i32
    %c0_i32_0 = arith.constant 0 : i32
    return %arg0, %c0_i32, %arg1 : i32, i32, i32
  }
  func.func @transform_1(%arg0: i32, %arg1: i32) -> (i32, i32, i32) {
    %c0_i32 = arith.constant 0 : i32
    %c0_i32_0 = arith.constant 0 : i32
    %c0_i32_1 = arith.constant 0 : i32
    return %arg0, %c0_i32, %c0_i32_0 : i32, i32, i32
  }
  func.func @transform_2(%arg0: i32, %arg1: i32) -> (i32, i32, i32) {
    %c0_i32 = arith.constant 0 : i32
    %c0_i32_0 = arith.constant 0 : i32
    %c0_i32_1 = arith.constant 0 : i32
    return %arg0, %c0_i32, %c0_i32_0 : i32, i32, i32
  }
}

</mosaic_0001>

<llo_original>
// kernel: tpu_custom_call.1
$region0: #{tpu_custom_call.1}
  #allocation0 [shape = 'u32[]', space=smem, size = 0x4, offset = 0x4, fixed_abs, tag = 'smem constant byte address 0x4 - core index']
  #allocation1 [shape = 'u32[144,128]{1,0:T(1,128)}', space=vmem, size = 0x12000, scoped, tag = 'internal scratch']
  %s0 = inlined_call_operand.hbm [shape: f32[2,8,16], index: 0, kind: input, shape index: {}]
  %s1 = inlined_call_operand.vmem [shape: f32[2,8,1], index: 1, kind: output, shape index: {0}]
  %s2 = inlined_call_operand.vmem [shape: f32[2,8,1], index: 2, kind: output, shape index: {1}]
  %3 = xla_tuple %s1, %s2
  %s4 = sld [smem:[#allocation0]]
  $region57: #{tpu_custom_call.1} parent=0
    _
  %s6 = ssub.s32 1, %s4
  %s7 = scalar_select 0, %s6, %s4
  $region1: #{tpu_custom_call.1} parent=0
    #allocation2 [shape = 'u8[8192]{0}', space=vmem, size = 0x2000, scoped, tag = 'input window, operand 0']
    #allocation3 [shape = 's32[2]{0}', space=sflag, size = 0x8, scoped, tag = 'scoped memory for tpu_custom_call.1']
    %8 = vsyncpa [#allocation3], 0
    %s9 = scalar_lea.sflag [#allocation3], 1
    %10 = vsyncpa %s9, 0
    loop: start=0, step=1, limit=4
    $region2: #{tpu_custom_call.1} parent=1 // loop_pre_header
      _
    $region3: #{tpu_custom_call.1} parent=1 // loop_header
      %s12 = sphi 0, %s16
      %p13 = scmp.ge.s32.totalorder %s12, 4
      %s19 = sphi 0, %s31
      %s20 = sphi 0, %s27
      %s21 = sphi 0, %s19
      %s22 = sphi 0, %s20
      %s23 = sphi 0, %s21
      %s24 = sphi 0, %s22
      %s36 = sphi 0, %s38
      %s39 = sphi 0, %s36
      %s40 = sphi 0, %s39
      %s56 = sphi 0, %s40
      %s62 = sphi 0, %s64
      %s65 = sphi 0, %s62
      %s66 = sphi 0, %s65
      %s82 = sphi 0, %s66
      %s88 = sphi 0, %s90
      %s91 = sphi 0, %s88
      %s92 = sphi 0, %s91
      %s108 = sphi 0, %s92
    $region4: #{tpu_custom_call.1} parent=1 // loop_header_branch
      %15 = sbr.rel (%p13) target = $region8
    $region5: #{tpu_custom_call.1} parent=1 // loop_body
      %s17 = ssub.s32 %s12, 1
      %s18 = ssub.s32 %s12, 2
      %s25 = sadd.s32 1, %s20
      %p26 = scmp.ge.s32.totalorder %s25, 1
      %s27 = scalar_select %p26, 0, %s25
      %s28 = sadd.s32 1, %s19
      %s29 = scalar_select %p26, %s28, %s19
      %p30 = scmp.ge.s32.totalorder %s29, 2
      %s31 = scalar_select %p30, 0, %s29
      %s32 = ssub.s32 %s19, %s31
      %s33 = ssub.s32 %s20, %s27
      %s34 = sor.u32 %s32, %s33
      %p35 = scmp.eq.s32.totalorder %s34, 0
      %s37 = sadd.s32 %s36, 1
      %s38 = scalar_select %p35, %s36, %s37
      %p41 = pneg %p35
      %p42 = scmp.eq.s32.totalorder %s12, 1
      %p43 = por %p41, %p42
      %p44 = scmp.ne.s32.totalorder %s36, %s39
      %p45 = scmp.eq.s32.totalorder %s12, 0
      %p46 = por %p44, %p45
      %p47 = scmp.ne.s32.totalorder %s36, %s39
      %p48 = scmp.eq.s32.totalorder %s17, 1
      %p49 = por %p47, %p48
      %p50 = scmp.ne.s32.totalorder %s39, %s40
      %p51 = scmp.eq.s32.totalorder %s17, 0
      %p52 = por %p50, %p51
      %p53 = scmp.ne.s32.totalorder %s39, %s40
      %p54 = scmp.eq.s32.totalorder %s18, 1
      %p55 = por %p53, %p54
      %p57 = scmp.ne.s32.totalorder %s40, %s56
      %p58 = scmp.eq.s32.totalorder %s18, 0
      %p59 = por %p57, %p58
      %s60 = ssub.s32 %s19, %s31
      %p61 = scmp.eq.s32.totalorder %s60, 0
      %s63 = sadd.s32 %s62, 1
      %s64 = scalar_select %p61, %s62, %s63
      %p67 = pneg %p61
      %p68 = scmp.eq.s32.totalorder %s12, 1
      %p69 = por %p67, %p68
      %p70 = scmp.ne.s32.totalorder %s62, %s65
      %p71 = scmp.eq.s32.totalorder %s12, 0
      %p72 = por %p70, %p71
      %p73 = scmp.ne.s32.totalorder %s62, %s65
      %p74 = scmp.eq.s32.totalorder %s17, 1
      %p75 = por %p73, %p74
      %p76 = scmp.ne.s32.totalorder %s65, %s66
      %p77 = scmp.eq.s32.totalorder %s17, 0
      %p78 = por %p76, %p77
      %p79 = scmp.ne.s32.totalorder %s65, %s66
      %p80 = scmp.eq.s32.totalorder %s18, 1
      %p81 = por %p79, %p80
      %p83 = scmp.ne.s32.totalorder %s66, %s82
      %p84 = scmp.eq.s32.totalorder %s18, 0
      %p85 = por %p83, %p84
      %s86 = ssub.s32 %s19, %s31
      %p87 = scmp.eq.s32.totalorder %s86, 0
      %s89 = sadd.s32 %s88, 1
      %s90 = scalar_select %p87, %s88, %s89
      %p93 = pneg %p87
      %p94 = scmp.eq.s32.totalorder %s12, 1
      %p95 = por %p93, %p94
      %p96 = scmp.ne.s32.totalorder %s88, %s91
      %p97 = scmp.eq.s32.totalorder %s12, 0
      %p98 = por %p96, %p97
      %p99 = scmp.ne.s32.totalorder %s88, %s91
      %p100 = scmp.eq.s32.totalorder %s17, 1
      %p101 = por %p99, %p100
      %p102 = scmp.ne.s32.totalorder %s91, %s92
      %p103 = scmp.eq.s32.totalorder %s17, 0
      %p104 = por %p102, %p103
      %p105 = scmp.ne.s32.totalorder %s91, %s92
      %p106 = scmp.eq.s32.totalorder %s18, 1
      %p107 = por %p105, %p106
      %p109 = scmp.ne.s32.totalorder %s92, %s108
      %p110 = scmp.eq.s32.totalorder %s18, 0
      %p111 = por %p109, %p110
      %p112 = scmp.le.s32.totalorder 1, %s12
      %p113 = scmp.lt.s32.totalorder %s12, 3
      %p114 = pnand %p112, %p113
      %p115 = pneg %p114
      // Predicated region
      $region9: #{tpu_custom_call.1} parent=5 // pred_check
        _
      $region10: #{tpu_custom_call.1} parent=5 // pred_check_branch
        %117 = sbr.rel (%p114) target = $region12
      $region11: #{tpu_custom_call.1} parent=5 // pred_region
        %s118 = ssub.s32 %s12, 1
      $region12: #{tpu_custom_call.1} parent=5 // pred_fallthru
        _
      %p119 = scmp.lt.s32.totalorder %s12, 2
      // Predicated region
      $region13: #{tpu_custom_call.1} parent=5 // pred_check
        %p120 = pneg %p119
      $region14: #{tpu_custom_call.1} parent=5 // pred_check_branch
        %122 = sbr.rel (%p120) target = $region16
      $region15: #{tpu_custom_call.1} parent=5 // pred_region
        // Predicated region
        $region17: #{tpu_custom_call.1} parent=15 // pred_check
          %p123 = pneg %p46
        $region18: #{tpu_custom_call.1} parent=15 // pred_check_branch
          %125 = sbr.rel (%p123) target = $region20
        $region19: #{tpu_custom_call.1} parent=15 // pred_region
          %s126 = sand.u32 %s36, 1
          %s127 = scalar_lea.sflag [#allocation3], %s126
          %s128 = sand.u32 %s36, 1
          %s129 = smul.addr %s128, 8
          %s130 = scalar_lea.vmem [#allocation2], %s129
          %s132 = ssub.s32 128, 128
          %133 = vsyncadd %s127, %s132
          %s134 = sadd.s32 %s20, %s19
          %s135 = smul.addr %s134, 128
          %s136 = scalar_lea.hbm %s0, %s135
          %s138 = sshll.u32 %s130, 4
          %s139 = int_to_ptr.vmem [resolvable:$true] %s138
          %141 = dma.hbm_to_vmem [thread:$0]  %s136, 128, %s139, %s127
        $region20: #{tpu_custom_call.1} parent=15 // pred_fallthru
          _
      $region16: #{tpu_custom_call.1} parent=5 // pred_fallthru
        _
      %p142 = scmp.le.s32.totalorder 1, %s12
      %p143 = scmp.lt.s32.totalorder %s12, 3
      %p144 = pnand %p142, %p143
      %p145 = pneg %p144
      // Predicated region
      $region21: #{tpu_custom_call.1} parent=5 // pred_check
        _
      $region22: #{tpu_custom_call.1} parent=5 // pred_check_branch
        %147 = sbr.rel (%p144) target = $region24
      $region23: #{tpu_custom_call.1} parent=5 // pred_region
        %s148 = ssub.s32 %s12, 1
        %s149 = sand.u32 %s39, 1
        %s150 = scalar_lea.sflag [#allocation3], %s149
        %s151 = sand.u32 %s39, 1
        %s152 = smul.addr %s151, 8
        %s153 = scalar_lea.vmem [#allocation2], %s152
        // Predicated region
        $region25: #{tpu_custom_call.1} parent=23 // pred_check
          %p154 = pneg %p52
        $region26: #{tpu_custom_call.1} parent=23 // pred_check_branch
          %156 = sbr.rel (%p154) target = $region28
        $region27: #{tpu_custom_call.1} parent=23 // pred_region
          %157 = dma.done %s150, 128
        $region28: #{tpu_custom_call.1} parent=23 // pred_fallthru
          _
        %s158 = sand.u32 %s39, 1
        %s159 = scalar_lea.sflag [#allocation3], %s158
        %s160 = sand.u32 %s39, 1
        %s161 = smul.addr %s160, 8
        %s162 = scalar_lea.vmem [#allocation2], %s161
        %p163 = pneg %p52
        %p164 = pneg %p49
        %p165 = pneg %p78
        %p166 = pneg %p75
        %p167 = scmp.lt.s32.totalorder %s21, 1
        %s168 = scalar_select %p167, %s21, 1
        %s169 = smul.addr %s168, 8
        %s170 = scalar_lea.vmem %s1, %s169
        %p171 = pneg %p104
        %p172 = pneg %p101
        %p173 = scmp.lt.s32.totalorder %s21, 1
        %s174 = scalar_select %p173, %s21, 1
        %s175 = smul.addr %s174, 8
        %s176 = scalar_lea.vmem %s2, %s175
        %p177 = scmp.lt.s32.totalorder %s21, 1
        %s178 = scalar_select %p177, %s21, 1
        %s179 = smul.addr %s178, 8
        %s180 = scalar_lea.vmem %s1, %s179
        %p181 = scmp.lt.s32.totalorder %s21, 1
        %s182 = scalar_select %p181, %s21, 1
        %s183 = smul.addr %s182, 8
        %s184 = scalar_lea.vmem %s2, %s183
        %v185 = vld [vmem:[%s153] sm:$0xff]
        %vm186 = vcmask 130048
        %v187 = vsel %vm186, %v185, 0.0
        %188 = vadd.xlane.f32.xlu0 %v187
        %v189 = vpop.xlane.xlu0 %188
        %v190 = vmul.f32 %v185, %v185
        %v191 = vsel %vm186, %v190, 0.0
        %192 = vadd.xlane.f32.xlu0 %v191
        %v193 = vpop.xlane.xlu0 %192
        %p194 = scmp.eq.s32.totalorder %s22, 0
        // Predicated region
        $region29: #{tpu_custom_call.1} parent=23 // pred_check
          %p195 = pneg %p194
        $region30: #{tpu_custom_call.1} parent=23 // pred_check_branch
          %197 = sbr.rel (%p195) target = $region32
        $region31: #{tpu_custom_call.1} parent=23 // pred_region
          %vm198 = vcmask 7168
          %199 = vst.msk [vmem:[%s180] sm:$0xff] %vm198, %v189
          %200 = vst.msk [vmem:[%s184] sm:$0xff] %vm198, %v193
        $region32: #{tpu_custom_call.1} parent=23 // pred_fallthru
          _
        %p201 = scmp.ne.s32.totalorder %s22, 0
        // Predicated region
        $region33: #{tpu_custom_call.1} parent=23 // pred_check
          %p202 = pneg %p201
        $region34: #{tpu_custom_call.1} parent=23 // pred_check_branch
          %204 = sbr.rel (%p202) target = $region36
        $region35: #{tpu_custom_call.1} parent=23 // pred_region
          %v205 = vld [vmem:[%s180] sm:$0xff]
          %v206 = vadd.f32 %v205, %v189
          %vm207 = vcmask 7168
          %208 = vst.msk [vmem:[%s180] sm:$0xff] %vm207, %v206
          %v209 = vld [vmem:[%s184] sm:$0xff]
          %v210 = vadd.f32 %v209, %v193
          %211 = vst.msk [vmem:[%s184] sm:$0xff] %vm207, %v210
        $region36: #{tpu_custom_call.1} parent=23 // pred_fallthru
          _
        %p212 = scmp.lt.s32.totalorder %s21, 1
        %s213 = scalar_select %p212, %s21, 1
        %s214 = smul.addr %s213, 8
        %s215 = scalar_lea.vmem %s1, %s214
        %p216 = scmp.lt.s32.totalorder %s21, 1
        %s217 = scalar_select %p216, %s21, 1
        %s218 = smul.addr %s217, 8
        %s219 = scalar_lea.vmem %s2, %s218
        // Predicated region
        $region37: #{tpu_custom_call.1} parent=23 // pred_check
          %p220 = pneg %p75
        $region38: #{tpu_custom_call.1} parent=23 // pred_check_branch
          %222 = sbr.rel (%p220) target = $region40
        $region39: #{tpu_custom_call.1} parent=23 // pred_region
          _
        $region40: #{tpu_custom_call.1} parent=23 // pred_fallthru
          _
        // Predicated region
        $region41: #{tpu_custom_call.1} parent=23 // pred_check
          %p223 = pneg %p101
        $region42: #{tpu_custom_call.1} parent=23 // pred_check_branch
          %225 = sbr.rel (%p223) target = $region44
        $region43: #{tpu_custom_call.1} parent=23 // pred_region
          _
        $region44: #{tpu_custom_call.1} parent=23 // pred_fallthru
          _
      $region24: #{tpu_custom_call.1} parent=5 // pred_fallthru
        _
      %p226 = scmp.le.s32.totalorder 2, %s12
      // Predicated region
      $region45: #{tpu_custom_call.1} parent=5 // pred_check
        %p227 = pneg %p226
      $region46: #{tpu_custom_call.1} parent=5 // pred_check_branch
        %229 = sbr.rel (%p227) target = $region48
      $region47: #{tpu_custom_call.1} parent=5 // pred_region
        %s230 = ssub.s32 %s12, 2
        // Predicated region
        $region49: #{tpu_custom_call.1} parent=47 // pred_check
          %p231 = pneg %p81
        $region50: #{tpu_custom_call.1} parent=47 // pred_check_branch
          %233 = sbr.rel (%p231) target = $region52
        $region51: #{tpu_custom_call.1} parent=47 // pred_region
          %p234 = scmp.lt.s32.totalorder %s23, 1
          %s235 = scalar_select %p234, %s23, 1
          %s236 = smul.addr %s235, 8
          %s237 = scalar_lea.vmem %s1, %s236
        $region52: #{tpu_custom_call.1} parent=47 // pred_fallthru
          _
        // Predicated region
        $region53: #{tpu_custom_call.1} parent=47 // pred_check
          %p238 = pneg %p107
        $region54: #{tpu_custom_call.1} parent=47 // pred_check_branch
          %240 = sbr.rel (%p238) target = $region56
        $region55: #{tpu_custom_call.1} parent=47 // pred_region
          %p241 = scmp.lt.s32.totalorder %s23, 1
          %s242 = scalar_select %p241, %s23, 1
          %s243 = smul.addr %s242, 8
          %s244 = scalar_lea.vmem %s2, %s243
        $region56: #{tpu_custom_call.1} parent=47 // pred_fallthru
          _
      $region48: #{tpu_custom_call.1} parent=5 // pred_fallthru
        _
    $region6: #{tpu_custom_call.1} parent=1 // loop_footer
      %s16 = sadd.s32 1, %s12
    $region7: #{tpu_custom_call.1} parent=1 // loop_footer_branch
      %11 = sbr.rel target = $region3
    $region8: #{tpu_custom_call.1} parent=1 // loop_exit
      _
    %245 = vsyncpa [#allocation3], 1
    %s246 = scalar_lea.sflag [#allocation3], 1
    %247 = vsyncpa %s246, 1

</llo_original>
